<compile_context>
chip_gen: v6e
topology: v6e:2x2x1
jax: 0.10.0
libtpu: 0.0.40
codegen_flags: <defaults>
</compile_context>

<pallas_src>
import math

import jax
import jax.numpy as jnp
from jax.experimental import pallas as pl
from jax.experimental.pallas import tpu as pltpu


LANE = 128          # TPU lane width: output last dim is padded to this
MAX_BLOCK_B = 256   # keeps h:(block_b,72) f32 ~half the vreg file (no spills)


# --------------------------------------------------------------------------
# Kernel: full NaiveNN forward for one batch chunk
# --------------------------------------------------------------------------
def naive_nn_kernel(x_ref, w1_ref, b1_ref, w2_ref, b2_ref, out_ref):
    x = x_ref[...]                                                   # (Bb, Din)

    # hidden1 + ReLU   (dropout1 = identity in eval)
    h = jnp.dot(x, w1_ref[...], preferred_element_type=jnp.float32) + b1_ref[...]
    h = jnp.maximum(h, 0.0)                                          # (Bb, 72)
    # TODO(synk): training-mode dropout (p=0.27) would need pltpu.prng_seed +
    # pltpu.stateful_bernoulli and 1/(1-p) scaling; inference semantics here.

    # output projection into the lane-padded (Bb, 128) output tile
    y = jnp.dot(h, w2_ref[...], preferred_element_type=jnp.float32) + b2_ref[...]
    out_ref[...] = y.astype(out_ref.dtype)                           # (Bb, 128)


# --------------------------------------------------------------------------
# Wrapper
# --------------------------------------------------------------------------
def _round_up(n, m):
    return ((n + m - 1) // m) * m


def naive_nn_forward(x, params, *, block_b=None):
    """x: (B, Din) float32 -> (B, Dout) float32."""
    B, Din = x.shape
    Dout = params["w2"].shape[1]

    # ---- lane-dense output: pad Dout -> multiple of 128 with zero columns ----
    dout_pad = max(LANE, _round_up(Dout, LANE))
    w2, b2 = params["w2"], params["b2"]
    if dout_pad != Dout:
        w2 = jnp.pad(w2, ((0, 0), (0, dout_pad - Dout)))
        b2 = jnp.pad(b2, ((0, 0), (0, dout_pad - Dout)))

    # ---- batch chunking: multiple of 8, capped for vreg pressure ----
    if block_b is None:
        block_b = min(MAX_BLOCK_B, _round_up(B, 8))
    block_b = max(8, (block_b // 8) * 8)

    b_pad = _round_up(B, block_b)
    x_p = jnp.pad(x, ((0, b_pad - B), (0, 0))) if b_pad != B else x
    num_blocks = b_pad // block_b

    full = lambda a: pl.BlockSpec(a.shape, lambda i: (0,) * a.ndim)

    out = pl.pallas_call(
        naive_nn_kernel,
        out_shape=jax.ShapeDtypeStruct((b_pad, dout_pad), jnp.float32),
        grid_spec=pltpu.PrefetchScalarGridSpec(
            num_scalar_prefetch=0,
            grid=(num_blocks,),
            in_specs=[
                pl.BlockSpec((block_b, Din), lambda i: (i, 0)),
                full(params["w1"]), full(params["b1"]),
                full(w2), full(b2),
            ],
            out_specs=pl.BlockSpec((block_b, dout_pad), lambda i: (i, 0)),
        ),
        compiler_params=pltpu.CompilerParams(
            # Batch-chunk axis is embarrassingly parallel: with block_b<=256 a
            # large batch gives >=2 grid steps, letting v7x split across its
            # two TensorCores and letting DMA double-buffering hide the x
            # stream on all generations.
            dimension_semantics=("parallel",),
            # Explicit scoped-VMEM budget so v7x (64 MiB phys / 32 MiB default
            # scoped) behaves identically to v5e/v6e; working set is << 1 MiB.
            vmem_limit_bytes=32 << 20,
        ),
    )(x_p, params["w1"], params["b1"], w2, b2)

    # Strip batch padding and the lane-padding columns outside the kernel.
    return out[:B, :Dout]


# --------------------------------------------------------------------------
# Pure-JAX reference (for verification)
# --------------------------------------------------------------------------
def reference_forward(x, params):
    h = jnp.maximum(x @ params["w1"] + params["b1"], 0.0)
    return h @ params["w2"] + params["b2"]


# --------------------------------------------------------------------------
# Deterministic parameter init (shapes from NaiveNN.__init__; PyTorch Linear
# default: uniform(-1/sqrt(fan_in), 1/sqrt(fan_in)) for weights and biases)
# --------------------------------------------------------------------------
def init_params(key, input_size, output_size, hidden=72):
    keys = jax.random.split(key, 4)

    def lin(kw, kb, fan_in, fan_out):
        bound = 1.0 / math.sqrt(fan_in)
        w = jax.random.uniform(kw, (fan_in, fan_out), jnp.float32, -bound, bound)
        b = jax.random.uniform(kb, (1, fan_out), jnp.float32, -bound, bound)
        return w, b

    p = {}
    p["w1"], p["b1"] = lin(keys[0], keys[1], input_size, hidden)     # hidden1: 72 wide
    p["w2"], p["b2"] = lin(keys[2], keys[3], hidden, output_size)    # output layer
    return p


if __name__ == "__main__":
    # Small shapes consistent with the module: batch=8, input_size=16,
    # output_size=4. (hidden_size ctor arg is unused in forward; hidden = 72.)
    B, INPUT_SIZE, OUTPUT_SIZE = 8, 16, 4

    key = jax.random.PRNGKey(0)
    kx, kp, kx2 = jax.random.split(key, 3)
    x = jax.random.normal(kx, (B, INPUT_SIZE), dtype=jnp.float32)
    params = init_params(kp, INPUT_SIZE, OUTPUT_SIZE)

    out = naive_nn_forward(x, params)
    out = jax.block_until_ready(out)
    ref = reference_forward(x, params)
    assert out.shape == (B, OUTPUT_SIZE)
    assert jnp.allclose(out, ref, atol=1e-5, rtol=1e-5), "mismatch vs JAX reference"

    # Secondary check: non-multiple batch exercises the padded multi-block path
    # (batch padding, lane-padded output, grid > 1 step).
    B2 = 600
    x2 = jax.random.normal(kx2, (B2, INPUT_SIZE), dtype=jnp.float32)
    out2 = jax.block_until_ready(naive_nn_forward(x2, params))
    ref2 = reference_forward(x2, params)
    assert out2.shape == (B2, OUTPUT_SIZE)
    assert jnp.allclose(out2, ref2, atol=1e-5, rtol=1e-5), "mismatch (multi-block path)"

    print("KERNEL_OK")
</pallas_src>

<mosaic_0001>
module attributes {stable_mosaic.version = 11 : i64} {
  func.func @naive_nn_kernel(%arg0: i32, %arg1: memref<8x16xf32, #tpu.memory_space<vmem>>, %arg2: memref<16x72xf32, #tpu.memory_space<vmem>>, %arg3: memref<1x72xf32, #tpu.memory_space<vmem>>, %arg4: memref<72x128xf32, #tpu.memory_space<vmem>>, %arg5: memref<1x128xf32, #tpu.memory_space<vmem>>, %arg6: memref<8x128xf32, #tpu.memory_space<vmem>>) attributes {dimension_semantics = [#tpu.dimension_semantics<parallel>], iteration_bounds = array<i64: 1>, scalar_prefetch = 0 : i64, scratch_operands = 0 : i64, tpu.core_type = #tpu.core_type<tc>, window_params = [{transform_indices = @transform_0, window_bounds = array<i64: 8, 16>}, {pipeline_mode = #tpu.pipeline_mode<synchronous>, transform_indices = @transform_1, window_bounds = array<i64: 16, 72>}, {pipeline_mode = #tpu.pipeline_mode<synchronous>, transform_indices = @transform_2, window_bounds = array<i64: 1, 72>}, {pipeline_mode = #tpu.pipeline_mode<synchronous>, transform_indices = @transform_3, window_bounds = array<i64: 72, 128>}, {pipeline_mode = #tpu.pipeline_mode<synchronous>, transform_indices = @transform_4, window_bounds = array<i64: 1, 128>}, {transform_indices = @transform_5, window_bounds = array<i64: 8, 128>}]} {
    %c0 = arith.constant 0 : index
    %c0_0 = arith.constant 0 : index
    %0 = vector.load %arg1[%c0, %c0_0] : memref<8x16xf32, #tpu.memory_space<vmem>>, vector<8x16xf32>
    %c0_1 = arith.constant 0 : index
    %c0_2 = arith.constant 0 : index
    %1 = vector.load %arg2[%c0_1, %c0_2] : memref<16x72xf32, #tpu.memory_space<vmem>>, vector<16x72xf32>
    %cst = arith.constant dense<0.000000e+00> : vector<8x72xf32>
    %2 = tpu.matmul %0, %1, %cst {dimension_numbers = #tpu.dot_dimension_numbers<[1], [0], [0], [1], [0, 0, 1, 1], [], []>} : vector<8x16xf32>, vector<16x72xf32>, vector<8x72xf32> -> vector<8x72xf32>
    %c0_3 = arith.constant 0 : index
    %c0_4 = arith.constant 0 : index
    %3 = vector.load %arg3[%c0_3, %c0_4] : memref<1x72xf32, #tpu.memory_space<vmem>>, vector<1x72xf32>
    %4 = vector.broadcast %3 : vector<1x72xf32> to vector<8x72xf32>
    %5 = arith.addf %2, %4 : vector<8x72xf32>
    %cst_5 = arith.constant 0.000000e+00 : f32
    %6 = vector.broadcast %cst_5 : f32 to vector<8x72xf32>
    %7 = arith.maximumf %5, %6 : vector<8x72xf32>
    %c0_6 = arith.constant 0 : index
    %c0_7 = arith.constant 0 : index
    %8 = vector.load %arg4[%c0_6, %c0_7] : memref<72x128xf32, #tpu.memory_space<vmem>>, vector<72x128xf32>
    %cst_8 = arith.constant dense<0.000000e+00> : vector<8x128xf32>
    %9 = tpu.matmul %7, %8, %cst_8 {dimension_numbers = #tpu.dot_dimension_numbers<[1], [0], [0], [1], [0, 0, 1, 1], [], []>} : vector<8x72xf32>, vector<72x128xf32>, vector<8x128xf32> -> vector<8x128xf32>
    %c0_9 = arith.constant 0 : index
    %c0_10 = arith.constant 0 : index
    %10 = vector.load %arg5[%c0_9, %c0_10] : memref<1x128xf32, #tpu.memory_space<vmem>>, vector<1x128xf32>
    %11 = vector.broadcast %10 : vector<1x128xf32> to vector<8x128xf32>
    %12 = arith.addf %9, %11 : vector<8x128xf32>
    %c0_11 = arith.constant 0 : index
    %c0_12 = arith.constant 0 : index
    %13 = vector.load %arg6[%c0_11, %c0_12] : memref<8x128xf32, #tpu.memory_space<vmem>>, vector<8x128xf32>
    tpu.vector_store %arg6[%c0_11, %c0_12], %12 {strides = array<i32>} : memref<8x128xf32, #tpu.memory_space<vmem>>, vector<8x128xf32>,
    return
  }
  func.func @transform_0(%arg0: i32) -> (i32, i32) {
    %c0_i32 = arith.constant 0 : i32
    %c0_i32_0 = arith.constant 0 : i32
    return %arg0, %c0_i32 : i32, i32
  }
  func.func @transform_1(%arg0: i32) -> (i32, i32) {
    %c0_i32 = arith.constant 0 : i32
    %c0_i32_0 = arith.constant 0 : i32
    %c0_i32_1 = arith.constant 0 : i32
    return %c0_i32, %c0_i32_0 : i32, i32
  }
  func.func @transform_2(%arg0: i32) -> (i32, i32) {
    %c0_i32 = arith.constant 0 : i32
    %c0_i32_0 = arith.constant 0 : i32
    %c0_i32_1 = arith.constant 0 : i32
    return %c0_i32, %c0_i32_0 : i32, i32
  }
  func.func @transform_3(%arg0: i32) -> (i32, i32) {
    %c0_i32 = arith.constant 0 : i32
    %c0_i32_0 = arith.constant 0 : i32
    %c0_i32_1 = arith.constant 0 : i32
    return %c0_i32, %c0_i32_0 : i32, i32
  }
  func.func @transform_4(%arg0: i32) -> (i32, i32) {
    %c0_i32 = arith.constant 0 : i32
    %c0_i32_0 = arith.constant 0 : i32
    %c0_i32_1 = arith.constant 0 : i32
    return %c0_i32, %c0_i32_0 : i32, i32
  }
  func.func @transform_5(%arg0: i32) -> (i32, i32) {
    %c0_i32 = arith.constant 0 : i32
    %c0_i32_0 = arith.constant 0 : i32
    return %arg0, %c0_i32 : i32, i32
  }
}

</mosaic_0001>

<llo_original>
// kernel: tpu_custom_call.1
$region0: #{tpu_custom_call.1}
  #allocation0 [shape = 'u32[]', space=smem, size = 0x4, offset = 0x4, fixed_abs, tag = 'smem constant byte address 0x4 - core index']
  #allocation1 [shape = 'u32[144,128]{1,0:T(1,128)}', space=vmem, size = 0x12000, scoped, tag = 'internal scratch']
  %s0 = inlined_call_operand.hbm [shape: f32[8,16], index: 0, kind: input, shape index: {}]
  %s1 = inlined_call_operand.hbm [shape: f32[16,72], index: 1, kind: input, shape index: {}]
  %s2 = inlined_call_operand.vmem [shape: f32[1,72], index: 2, kind: input, shape index: {}]
  %s3 = inlined_call_operand.hbm [shape: f32[72,128], index: 3, kind: input, shape index: {}]
  %s4 = inlined_call_operand.vmem [shape: f32[1,128], index: 4, kind: input, shape index: {}]
  %s5 = inlined_call_operand.hbm [shape: f32[8,128], index: 5, kind: output, shape index: {}]
  %s6 = sld [smem:[#allocation0]]
  $region42: #{tpu_custom_call.1} parent=0
    _
  %s8 = ssub.s32 1, %s6
  %s9 = scalar_select 0, %s8, %s6
  $region1: #{tpu_custom_call.1} parent=0
    #allocation2 [shape = 'u8[4096]{0}', space=vmem, size = 0x1000, scoped, tag = 'input window, operand 0, single buffered']
    #allocation3 [shape = 's32[1]{0}', space=sflag, size = 0x4, scoped, tag = 'scoped memory for tpu_custom_call.1']
    #allocation4 [shape = 's32[1]{0}', space=sflag, size = 0x4, scoped, tag = 'scoped memory for tpu_custom_call.1']
    #allocation5 [shape = 'u8[8192]{0}', space=vmem, size = 0x2000, scoped, tag = 'input window, operand 1, single buffered']
    #allocation6 [shape = 's32[1]{0}', space=sflag, size = 0x4, scoped, tag = 'scoped memory for tpu_custom_call.1']
    #allocation7 [shape = 'u8[36864]{0}', space=vmem, size = 0x9000, scoped, tag = 'input window, operand 3, single buffered']
    #allocation8 [shape = 'u8[4096]{0}', space=vmem, size = 0x1000, scoped, tag = 'output window, operand 0, single buffered']
    %10 = vsyncpa [#allocation3], 0
    %11 = vsyncpa [#allocation6], 0
    %12 = vsyncpa [#allocation4], 0
    // Predicated region
    $region2: #{tpu_custom_call.1} parent=1 // pred_check
      _
    $region3: #{tpu_custom_call.1} parent=1 // pred_check_branch
      %14 = sbr.rel (0) target = $region5
    $region4: #{tpu_custom_call.1} parent=1 // pred_region
      %s16 = ssub.s32 128, 128
      %17 = vsyncadd [#allocation3], %s16
      %s19 = sshll.u32 [#allocation2], 4
      %s20 = int_to_ptr.vmem [resolvable:$true] %s19
      %22 = dma.hbm_to_vmem [thread:$0]  %s0, 128, %s20, [#allocation3]
    $region5: #{tpu_custom_call.1} parent=1 // pred_fallthru
      _
    // Predicated region
    $region6: #{tpu_custom_call.1} parent=1 // pred_check
      _
    $region7: #{tpu_custom_call.1} parent=1 // pred_check_branch
      %24 = sbr.rel (0) target = $region9
    $region8: #{tpu_custom_call.1} parent=1 // pred_region
      %s26 = ssub.s32 256, 256
      %27 = vsyncadd [#allocation6], %s26
      %s28 = sshll.u32 [#allocation5], 4
      %s29 = int_to_ptr.vmem [resolvable:$true] %s28
      %34 = dma.hbm_to_vmem [thread:$0]  %s1, 256, %s29, [#allocation6], 128, 128, 8
    $region9: #{tpu_custom_call.1} parent=1 // pred_fallthru
      _
    // Predicated region
    $region10: #{tpu_custom_call.1} parent=1 // pred_check
      _
    $region11: #{tpu_custom_call.1} parent=1 // pred_check_branch
      %36 = sbr.rel (0) target = $region13
    $region12: #{tpu_custom_call.1} parent=1 // pred_region
      _
    $region13: #{tpu_custom_call.1} parent=1 // pred_fallthru
      _
    // Predicated region
    $region14: #{tpu_custom_call.1} parent=1 // pred_check
      _
    $region15: #{tpu_custom_call.1} parent=1 // pred_check_branch
      %38 = sbr.rel (0) target = $region17
    $region16: #{tpu_custom_call.1} parent=1 // pred_region
      %s40 = ssub.s32 1152, 1152
      %41 = vsyncadd [#allocation6], %s40
      %s42 = sshll.u32 [#allocation7], 4
      %s43 = int_to_ptr.vmem [resolvable:$true] %s42
      %48 = dma.hbm_to_vmem [thread:$0]  %s3, 1152, %s43, [#allocation6], 128, 128, 8
    $region17: #{tpu_custom_call.1} parent=1 // pred_fallthru
      _
    // Predicated region
    $region18: #{tpu_custom_call.1} parent=1 // pred_check
      _
    $region19: #{tpu_custom_call.1} parent=1 // pred_check_branch
      %50 = sbr.rel (0) target = $region21
    $region20: #{tpu_custom_call.1} parent=1 // pred_region
      _
    $region21: #{tpu_custom_call.1} parent=1 // pred_fallthru
      _
    // Predicated region
    $region22: #{tpu_custom_call.1} parent=1 // pred_check
      _
    $region23: #{tpu_custom_call.1} parent=1 // pred_check_branch
      %52 = sbr.rel (0) target = $region25
    $region24: #{tpu_custom_call.1} parent=1 // pred_region
      %53 = dma.done [#allocation3], 128
    $region25: #{tpu_custom_call.1} parent=1 // pred_fallthru
      _
    // Predicated region
    $region26: #{tpu_custom_call.1} parent=1 // pred_check
      _
    $region27: #{tpu_custom_call.1} parent=1 // pred_check_branch
      %55 = sbr.rel (0) target = $region29
    $region28: #{tpu_custom_call.1} parent=1 // pred_region
      %56 = dma.done [#allocation6], 256
    $region29: #{tpu_custom_call.1} parent=1 // pred_fallthru
      _
    // Predicated region
    $region30: #{tpu_custom_call.1} parent=1 // pred_check
      _
    $region31: #{tpu_custom_call.1} parent=1 // pred_check_branch
      %58 = sbr.rel (0) target = $region33
    $region32: #{tpu_custom_call.1} parent=1 // pred_region
      %59 = dma.done [#allocation6], 1152
    $region33: #{tpu_custom_call.1} parent=1 // pred_fallthru
      _
    %v60 = vld [vmem:[#allocation2] sm:$0xff]
    %v61 = vld [vmem:[#allocation5] sm:$0xff]
    %v62 = vld [vmem:[#allocation5 + $0x8] sm:$0xff]
    %v63 = vld [vmem:[%s2] sm:$0x1]
    %v65 = vlaneseq
    %v66 = vshrl.u32 %v65, 7
    %v67 = vsub.s32 0, %v66
    %v68 = vrot.slane %v63, %v67
    %vm70 = vcmask 130048
    %v72 = vsel %vm70, %v60, 0
    %74 = vmatprep.subr.mxu0 0.0
    %75 = vmatpush1.msra.mxu0 0.0
    %76 = vmatprep.subr.mxu0 0.0
    %77 = vmatpush1.msra.mxu0 0.0
    %78 = vmatprep.subr.mxu0 0.0
    %79 = vmatpush1.msra.mxu0 0.0
    %80 = vmatprep.subr.mxu0 0.0
    %81 = vmatpush1.msra.mxu0 0.0
    %82 = vmatprep.subr.mxu0 0.0
    %83 = vmatpush1.msra.mxu0 0.0
    %84 = vmatprep.subr.mxu0 0.0
    %85 = vmatpush1.msra.mxu0 0.0
    %86 = vmatprep.subr.mxu0 0.0
    %87 = vmatpush1.msra.mxu0 0.0
    %88 = vmatprep.subr.mxu0 0.0
    %89 = vmatpush1.msra.mxu0 0.0
    %90 = vmatprep.subr.mxu0 0.0
    %91 = vmatpush1.msra.mxu0 0.0
    %92 = vmatprep.subr.mxu0 0.0
    %93 = vmatpush1.msra.mxu0 0.0
    %94 = vmatprep.subr.mxu0 0.0
    %95 = vmatpush1.msra.mxu0 0.0
    %96 = vmatprep.subr.mxu0 0.0
    %97 = vmatpush1.msra.mxu0 0.0
    %98 = vmatprep.subr.mxu0 0.0
    %99 = vmatpush1.msra.mxu0 0.0
    %100 = vmatprep.subr.mxu0 0.0
    %101 = vmatpush1.msra.mxu0 0.0
    %102 = vmatprep.subr.mxu0 0.0
    %103 = vmatpush1.msra.mxu0 %v62
    %104 = vmatprep.subr.mxu0 0.0
    %105 = vmatpush1.msra.mxu0 %v61
    %106 = vmatprep.subr.mxu0 0.0
    %107 = vmatpush2.msra.mxu0 0.0
    %108 = vmatprep.subr.mxu0 0.0
    %109 = vmatpush2.msra.mxu0 0.0
    %110 = vmatprep.subr.mxu0 0.0
    %111 = vmatpush2.msra.mxu0 0.0
    %112 = vmatprep.subr.mxu0 0.0
    %113 = vmatpush2.msra.mxu0 0.0
    %114 = vmatprep.subr.mxu0 0.0
    %115 = vmatpush2.msra.mxu0 0.0
    %116 = vmatprep.subr.mxu0 0.0
    %117 = vmatpush2.msra.mxu0 0.0
    %118 = vmatprep.subr.mxu0 0.0
    %119 = vmatpush2.msra.mxu0 0.0
    %120 = vmatprep.subr.mxu0 0.0
    %121 = vmatpush2.msra.mxu0 0.0
    %122 = vmatprep.subr.mxu0 0.0
    %123 = vmatpush2.msra.mxu0 0.0
    %124 = vmatprep.subr.mxu0 0.0
    %125 = vmatpush2.msra.mxu0 0.0
    %126 = vmatprep.subr.mxu0 0.0
    %127 = vmatpush2.msra.mxu0 0.0
    %128 = vmatprep.subr.mxu0 0.0
    %129 = vmatpush2.msra.mxu0 0.0
    %130 = vmatprep.subr.mxu0 0.0
    %131 = vmatpush2.msra.mxu0 0.0
    %132 = vmatprep.subr.mxu0 0.0
    %133 = vmatpush2.msra.mxu0 0.0
    %134 = vmatprep.subr.mxu0 0.0
    %135 = vmatpush2.msra.mxu0 0.0
    %136 = vmatprep.subr.mxu0 0.0
    %137 = vmatpush2.msra.mxu0 0.0
    %138 = vmatprep.mubr.f32.mxu0 0.0
    %139 = vmatmul.mubr.f32.gmra.mxu0 %v72
    %v140 = vpop.f32.mrf.mxu0
    %v141 = vadd.f32 %v68, %v140
    %v142 = vpop.f32.mrf.mxu0
    %143 = vdwg.mxu0
    %v144 = vmax.f32 %v141, 0.0
    %v145 = vld [vmem:[#allocation7] sm:$0xff]
    %v146 = vld [vmem:[#allocation7 + $0x8] sm:$0xff]
    %v147 = vld [vmem:[#allocation7 + $0x10] sm:$0xff]
    %v148 = vld [vmem:[#allocation7 + $0x18] sm:$0xff]
    %v149 = vld [vmem:[#allocation7 + $0x20] sm:$0xff]
    %v150 = vld [vmem:[#allocation7 + $0x28] sm:$0xff]
    %v151 = vld [vmem:[#allocation7 + $0x30] sm:$0xff]
    %v152 = vld [vmem:[#allocation7 + $0x38] sm:$0xff]
    %v153 = vld [vmem:[#allocation7 + $0x40] sm:$0xff]
    %v154 = vld [vmem:[%s4] sm:$0x1]
    %v156 = vlaneseq
    %v157 = vshrl.u32 %v156, 7
    %v158 = vsub.s32 0, %v157
    %v159 = vrot.slane %v154, %v158
    %vm161 = vcmask 588800
    %v163 = vsel %vm161, %v144, 0
    %165 = vmatprep.subr.mxu0 0.0
    %166 = vmatpush1.msra.mxu0 0.0
    %167 = vmatprep.subr.mxu0 0.0
    %168 = vmatpush1.msra.mxu0 0.0
    %169 = vmatprep.subr.mxu0 0.0
    %170 = vmatpush1.msra.mxu0 0.0
    %171 = vmatprep.subr.mxu0 0.0
    %172 = vmatpush1.msra.mxu0 0.0
    %173 = vmatprep.subr.mxu0 0.0
    %174 = vmatpush1.msra.mxu0 0.0
    %175 = vmatprep.subr.mxu0 0.0
    %176 = vmatpush1.msra.mxu0 0.0
    %177 = vmatprep.subr.mxu0 0.0
    %178 = vmatpush1.msra.mxu0 0.0
    %179 = vmatprep.subr.mxu0 0.0
    %180 = vmatpush1.msra.mxu0 %v153
    %181 = vmatprep.subr.mxu0 0.0
    %182 = vmatpush1.msra.mxu0 %v152
    %183 = vmatprep.subr.mxu0 0.0
    %184 = vmatpush1.msra.mxu0 %v151
    %185 = vmatprep.subr.mxu0 0.0
    %186 = vmatpush1.msra.mxu0 %v150
    %187 = vmatprep.subr.mxu0 0.0
    %188 = vmatpush1.msra.mxu0 %v149
    %189 = vmatprep.subr.mxu0 0.0
    %190 = vmatpush1.msra.mxu0 %v148
    %191 = vmatprep.subr.mxu0 0.0
    %192 = vmatpush1.msra.mxu0 %v147
    %193 = vmatprep.subr.mxu0 0.0
    %194 = vmatpush1.msra.mxu0 %v146
    %195 = vmatprep.subr.mxu0 0.0
    %196 = vmatpush1.msra.mxu0 %v145
    %197 = vmatprep.subr.mxu0 0.0
    %198 = vmatpush2.msra.mxu0 0.0
    %199 = vmatprep.subr.mxu0 0.0
    %200 = vmatpush2.msra.mxu0 0.0
    %201 = vmatprep.subr.mxu0 0.0
    %202 = vmatpush2.msra.mxu0 0.0
    %203 = vmatprep.subr.mxu0 0.0
    %204 = vmatpush2.msra.mxu0 0.0
    %205 = vmatprep.subr.mxu0 0.0
    %206 = vmatpush2.msra.mxu0 0.0
    %207 = vmatprep.subr.mxu0 0.0
    %208 = vmatpush2.msra.mxu0 0.0
    %209 = vmatprep.subr.mxu0 0.0
    %210 = vmatpush2.msra.mxu0 0.0
    %211 = vmatprep.subr.mxu0 0.0
    %212 = vmatpush2.msra.mxu0 0.0
    %213 = vmatprep.subr.mxu0 0.0
    %214 = vmatpush2.msra.mxu0 0.0
    %215 = vmatprep.subr.mxu0 0.0
    %216 = vmatpush2.msra.mxu0 0.0
    %217 = vmatprep.subr.mxu0 0.0
    %218 = vmatpush2.msra.mxu0 0.0
    %219 = vmatprep.subr.mxu0 0.0
    %220 = vmatpush2.msra.mxu0 0.0
    %221 = vmatprep.subr.mxu0 0.0
    %222 = vmatpush2.msra.mxu0 0.0
    %223 = vmatprep.subr.mxu0 0.0
    %224 = vmatpush2.msra.mxu0 0.0
    %225 = vmatprep.subr.mxu0 0.0
    %226 = vmatpush2.msra.mxu0 0.0
    %227 = vmatprep.subr.mxu0 0.0
    %228 = vmatpush2.msra.mxu0 0.0
    %229 = vmatprep.mubr.f32.mxu0 0.0
    %230 = vmatmul.mubr.f32.gmra.mxu0 %v163
    %v231 = vpop.f32.mrf.mxu0
    %v232 = vadd.f32 %v159, %v231
    %v233 = vpop.f32.mrf.mxu0
    %234 = vdwg.mxu0
    %235 = vst [vmem:[#allocation8] sm:$0xff] %v232
    // Predicated region
    $region34: #{tpu_custom_call.1} parent=1 // pred_check
      _
    $region35: #{tpu_custom_call.1} parent=1 // pred_check_branch
      %237 = sbr.rel (0) target = $region37
    $region36: #{tpu_custom_call.1} parent=1 // pred_region
      %s239 = ssub.s32 128, 128
      %240 = vsyncadd [#allocation4], %s239
      %s242 = sshll.u32 [#allocation8], 4
      %s243 = int_to_ptr.vmem [resolvable:$true] %s242
      %245 = dma.vmem_to_hbm [thread:$0]  %s243, 128, %s5, [#allocation4]
    $region37: #{tpu_custom_call.1} parent=1 // pred_fallthru
      _
    // Predicated region
    $region38: #{tpu_custom_call.1} parent=1 // pred_check
      _
    $region39: #{tpu_custom_call.1} parent=1 // pred_check_branch
      %247 = sbr.rel (0) target = $region41
    $region40: #{tpu_custom_call.1} parent=1 // pred_region
      %248 = dma.done [#allocation4], 128
    $region41: #{tpu_custom_call.1} parent=1 // pred_fallthru
      _
    %249 = vsyncpa [#allocation3], 1
    %250 = vsyncpa [#allocation6], 1
    %251 = vsyncpa [#allocation4], 1

</llo_original>
